<compile_context>
chip_gen: v7x
topology: tpu7x:2x2x1
jax: 0.10.0
libtpu: 0.0.40
codegen_flags: <defaults>
</compile_context>

<pallas_src>
import jax
import jax.numpy as jnp
from jax.experimental import pallas as pl
from jax.experimental.pallas import tpu as pltpu

LANE = 128      # feature dims padded to multiples of the 128-wide lane axis
SUBLANE = 16    # bf16 sublane packing -> batch tile multiple of 16


def _round_up(n, m):
    return ((n + m - 1) // m) * m


def half_mlp_kernel(x_ref,
                    w1_ref, b1_ref,
                    w2_ref, b2_ref,
                    w3_ref, b3_ref,
                    w4_ref, b4_ref,
                    o_ref):
    """One batch tile of the full 4-layer MLP, activations kept in bf16."""

    def half_linear(h_bf16, w_ref, b_ref):
        # HalfLinear: bf16 matmul (f32 MXU accumulation), cast to bf16, bf16 bias add.
        y = jnp.dot(h_bf16, w_ref[...], preferred_element_type=jnp.float32)
        return y.astype(jnp.bfloat16) + b_ref[...]          # (TILE_B, out) + (1, out)

    h = x_ref[...]                                            # already bf16
    # LinearBlock 1..3: HalfLinear -> ReLU (Dropout = identity in eval mode).
    h = jnp.maximum(half_linear(h, w1_ref, b1_ref), 0.0)
    h = jnp.maximum(half_linear(h, w2_ref, b2_ref), 0.0)
    h = jnp.maximum(half_linear(h, w3_ref, b3_ref), 0.0)
    # Final HalfLinear (no ReLU); HalfLinear output dtype is float32.
    o_ref[...] = half_linear(h, w4_ref, b4_ref).astype(jnp.float32)


def half_mlp(x, params):
    """x: [B, in_features] float32.
    params: dict with w{i}: [in, out] bf16 (pre-transposed vs PyTorch) and b{i}: [out] bf16.
    Returns [B, out_features] float32."""
    B, in_features = x.shape
    hidden = params["w1"].shape[1]
    out_features = params["w4"].shape[1]

    # Lane-dense padded dims.
    in_p = _round_up(in_features, LANE)
    hid_p = _round_up(hidden, LANE)
    out_p = _round_up(out_features, LANE)

    # Batch tile: ~1024 rows for large batches, otherwise one sublane-aligned tile.
    tile_b = 1024 if B >= 1024 else _round_up(B, SUBLANE)
    b_pad = _round_up(B, tile_b)

    # Wrapper-side bf16 cast (HalfLinear casts the input anyway) + zero padding.
    xb = jnp.pad(x.astype(jnp.bfloat16),
                 ((0, b_pad - B), (0, in_p - in_features)))

    def pad_w(w, rp, cp):
        return jnp.pad(w, ((0, rp - w.shape[0]), (0, cp - w.shape[1])))

    def pad_b(b, cp):
        return jnp.pad(b, (0, cp - b.shape[0])).reshape(1, cp)

    w1 = pad_w(params["w1"], in_p, hid_p);  b1 = pad_b(params["b1"], hid_p)
    w2 = pad_w(params["w2"], hid_p, hid_p); b2 = pad_b(params["b2"], hid_p)
    w3 = pad_w(params["w3"], hid_p, hid_p); b3 = pad_b(params["b3"], hid_p)
    w4 = pad_w(params["w4"], hid_p, out_p); b4 = pad_b(params["b4"], out_p)

    const = lambda i: (0, 0)   # weights/biases: same block every grid step (VMEM-resident)

    out_padded = pl.pallas_call(
        half_mlp_kernel,
        out_shape=jax.ShapeDtypeStruct((b_pad, out_p), jnp.float32),
        grid=(b_pad // tile_b,),
        in_specs=[
            pl.BlockSpec((tile_b, in_p), lambda i: (i, 0)),   # x: tiled over batch
            pl.BlockSpec((in_p, hid_p), const), pl.BlockSpec((1, hid_p), const),
            pl.BlockSpec((hid_p, hid_p), const), pl.BlockSpec((1, hid_p), const),
            pl.BlockSpec((hid_p, hid_p), const), pl.BlockSpec((1, hid_p), const),
            pl.BlockSpec((hid_p, out_p), const), pl.BlockSpec((1, out_p), const),
        ],
        out_specs=pl.BlockSpec((tile_b, out_p), lambda i: (i, 0)),
        compiler_params=pltpu.CompilerParams(
            dimension_semantics=("parallel",),        # shards batch tiles across v7x TCs
            vmem_limit_bytes=32 * 1024 * 1024,        # ample headroom vs tile footprint
        ),
    )(xb, w1, b1, w2, b2, w3, b3, w4, b4)

    return out_padded[:B, :out_features]


def init_params(key, in_features, hidden_size, out_features):
    """Deterministic synthetic parameters (shapes match the PyTorch module)."""
    dims = [(in_features, hidden_size),
            (hidden_size, hidden_size),
            (hidden_size, hidden_size),
            (hidden_size, out_features)]
    params = {}
    for i, (fan_in, fan_out) in enumerate(dims, start=1):
        key, kw, kb = jax.random.split(key, 3)
        bound = 1.0 / (fan_in ** 0.5)
        # PyTorch stores weight as [out, in]; we keep the transposed [in, out] layout.
        w = jax.random.uniform(kw, (fan_in, fan_out), jnp.float32, -bound, bound)
        b = jax.random.uniform(kb, (fan_out,), jnp.float32, -bound, bound)
        params[f"w{i}"] = w.astype(jnp.bfloat16)
        params[f"b{i}"] = b.astype(jnp.bfloat16)
    return params


def half_mlp_reference(x, params):
    """Pure-JAX reference mirroring the PyTorch HalfMLP (eval-mode) semantics."""
    h = x
    for i in range(1, 5):
        hb = h.astype(jnp.bfloat16)
        y = jnp.dot(hb, params[f"w{i}"],
                    preferred_element_type=jnp.float32).astype(jnp.bfloat16)
        y = y + params[f"b{i}"]
        h = y.astype(jnp.float32)
        if i < 4:
            h = jnp.maximum(h, 0.0)
    return h


if __name__ == "__main__":
    in_features, hidden_size, out_features = 16, 32, 8
    batch = 4

    key = jax.random.PRNGKey(0)
    key, kx = jax.random.split(key)
    x = jax.random.normal(kx, (batch, in_features), jnp.float32)

    params = init_params(key, in_features, hidden_size, out_features)

    out = half_mlp(x, params)
    out = jax.block_until_ready(out)

    ref = half_mlp_reference(x, params)
    assert out.shape == (batch, out_features)
    assert out.dtype == jnp.float32
    assert jnp.allclose(out, ref, atol=5e-2, rtol=5e-2)

    print("KERNEL_OK")
</pallas_src>

<mosaic_0001>
module attributes {stable_mosaic.version = 11 : i64} {
  func.func @half_mlp_kernel(%arg0: i32, %arg1: memref<16x128xbf16, #tpu.memory_space<vmem>>, %arg2: memref<128x128xbf16, #tpu.memory_space<vmem>>, %arg3: memref<1x128xbf16, #tpu.memory_space<vmem>>, %arg4: memref<128x128xbf16, #tpu.memory_space<vmem>>, %arg5: memref<1x128xbf16, #tpu.memory_space<vmem>>, %arg6: memref<128x128xbf16, #tpu.memory_space<vmem>>, %arg7: memref<1x128xbf16, #tpu.memory_space<vmem>>, %arg8: memref<128x128xbf16, #tpu.memory_space<vmem>>, %arg9: memref<1x128xbf16, #tpu.memory_space<vmem>>, %arg10: memref<16x128xf32, #tpu.memory_space<vmem>>) attributes {dimension_semantics = [#tpu.dimension_semantics<parallel>], iteration_bounds = array<i64: 1>, scalar_prefetch = 0 : i64, scratch_operands = 0 : i64, tpu.core_type = #tpu.core_type<tc>, window_params = [{transform_indices = @transform_0, window_bounds = array<i64: 16, 128>}, {pipeline_mode = #tpu.pipeline_mode<synchronous>, transform_indices = @transform_1, window_bounds = array<i64: 128, 128>}, {pipeline_mode = #tpu.pipeline_mode<synchronous>, transform_indices = @transform_2, window_bounds = array<i64: 1, 128>}, {pipeline_mode = #tpu.pipeline_mode<synchronous>, transform_indices = @transform_3, window_bounds = array<i64: 128, 128>}, {pipeline_mode = #tpu.pipeline_mode<synchronous>, transform_indices = @transform_4, window_bounds = array<i64: 1, 128>}, {pipeline_mode = #tpu.pipeline_mode<synchronous>, transform_indices = @transform_5, window_bounds = array<i64: 128, 128>}, {pipeline_mode = #tpu.pipeline_mode<synchronous>, transform_indices = @transform_6, window_bounds = array<i64: 1, 128>}, {pipeline_mode = #tpu.pipeline_mode<synchronous>, transform_indices = @transform_7, window_bounds = array<i64: 128, 128>}, {pipeline_mode = #tpu.pipeline_mode<synchronous>, transform_indices = @transform_8, window_bounds = array<i64: 1, 128>}, {transform_indices = @transform_9, window_bounds = array<i64: 16, 128>}]} {
    %c0 = arith.constant 0 : index
    %c0_0 = arith.constant 0 : index
    %0 = vector.load %arg1[%c0, %c0_0] : memref<16x128xbf16, #tpu.memory_space<vmem>>, vector<16x128xbf16>
    %c0_1 = arith.constant 0 : index
    %c0_2 = arith.constant 0 : index
    %1 = vector.load %arg2[%c0_1, %c0_2] : memref<128x128xbf16, #tpu.memory_space<vmem>>, vector<128x128xbf16>
    %cst = arith.constant dense<0.000000e+00> : vector<16x128xf32>
    %2 = tpu.matmul %0, %1, %cst {dimension_numbers = #tpu.dot_dimension_numbers<[1], [0], [0], [1], [0, 0, 1, 1], [], []>} : vector<16x128xbf16>, vector<128x128xbf16>, vector<16x128xf32> -> vector<16x128xf32>
    %3 = arith.truncf %2 : vector<16x128xf32> to vector<16x128xbf16>
    %c0_3 = arith.constant 0 : index
    %c0_4 = arith.constant 0 : index
    %4 = vector.load %arg3[%c0_3, %c0_4] : memref<1x128xbf16, #tpu.memory_space<vmem>>, vector<1x128xbf16>
    %5 = vector.broadcast %4 : vector<1x128xbf16> to vector<16x128xbf16>
    %6 = arith.addf %3, %5 : vector<16x128xbf16>
    %cst_5 = arith.constant 0.000000e+00 : bf16
    %7 = vector.broadcast %cst_5 : bf16 to vector<16x128xbf16>
    %8 = arith.maximumf %6, %7 : vector<16x128xbf16>
    %c0_6 = arith.constant 0 : index
    %c0_7 = arith.constant 0 : index
    %9 = vector.load %arg4[%c0_6, %c0_7] : memref<128x128xbf16, #tpu.memory_space<vmem>>, vector<128x128xbf16>
    %cst_8 = arith.constant dense<0.000000e+00> : vector<16x128xf32>
    %10 = tpu.matmul %8, %9, %cst_8 {dimension_numbers = #tpu.dot_dimension_numbers<[1], [0], [0], [1], [0, 0, 1, 1], [], []>} : vector<16x128xbf16>, vector<128x128xbf16>, vector<16x128xf32> -> vector<16x128xf32>
    %11 = arith.truncf %10 : vector<16x128xf32> to vector<16x128xbf16>
    %c0_9 = arith.constant 0 : index
    %c0_10 = arith.constant 0 : index
    %12 = vector.load %arg5[%c0_9, %c0_10] : memref<1x128xbf16, #tpu.memory_space<vmem>>, vector<1x128xbf16>
    %13 = vector.broadcast %12 : vector<1x128xbf16> to vector<16x128xbf16>
    %14 = arith.addf %11, %13 : vector<16x128xbf16>
    %cst_11 = arith.constant 0.000000e+00 : bf16
    %15 = vector.broadcast %cst_11 : bf16 to vector<16x128xbf16>
    %16 = arith.maximumf %14, %15 : vector<16x128xbf16>
    %c0_12 = arith.constant 0 : index
    %c0_13 = arith.constant 0 : index
    %17 = vector.load %arg6[%c0_12, %c0_13] : memref<128x128xbf16, #tpu.memory_space<vmem>>, vector<128x128xbf16>
    %cst_14 = arith.constant dense<0.000000e+00> : vector<16x128xf32>
    %18 = tpu.matmul %16, %17, %cst_14 {dimension_numbers = #tpu.dot_dimension_numbers<[1], [0], [0], [1], [0, 0, 1, 1], [], []>} : vector<16x128xbf16>, vector<128x128xbf16>, vector<16x128xf32> -> vector<16x128xf32>
    %19 = arith.truncf %18 : vector<16x128xf32> to vector<16x128xbf16>
    %c0_15 = arith.constant 0 : index
    %c0_16 = arith.constant 0 : index
    %20 = vector.load %arg7[%c0_15, %c0_16] : memref<1x128xbf16, #tpu.memory_space<vmem>>, vector<1x128xbf16>
    %21 = vector.broadcast %20 : vector<1x128xbf16> to vector<16x128xbf16>
    %22 = arith.addf %19, %21 : vector<16x128xbf16>
    %cst_17 = arith.constant 0.000000e+00 : bf16
    %23 = vector.broadcast %cst_17 : bf16 to vector<16x128xbf16>
    %24 = arith.maximumf %22, %23 : vector<16x128xbf16>
    %c0_18 = arith.constant 0 : index
    %c0_19 = arith.constant 0 : index
    %25 = vector.load %arg8[%c0_18, %c0_19] : memref<128x128xbf16, #tpu.memory_space<vmem>>, vector<128x128xbf16>
    %cst_20 = arith.constant dense<0.000000e+00> : vector<16x128xf32>
    %26 = tpu.matmul %24, %25, %cst_20 {dimension_numbers = #tpu.dot_dimension_numbers<[1], [0], [0], [1], [0, 0, 1, 1], [], []>} : vector<16x128xbf16>, vector<128x128xbf16>, vector<16x128xf32> -> vector<16x128xf32>
    %27 = arith.truncf %26 : vector<16x128xf32> to vector<16x128xbf16>
    %c0_21 = arith.constant 0 : index
    %c0_22 = arith.constant 0 : index
    %28 = vector.load %arg9[%c0_21, %c0_22] : memref<1x128xbf16, #tpu.memory_space<vmem>>, vector<1x128xbf16>
    %29 = vector.broadcast %28 : vector<1x128xbf16> to vector<16x128xbf16>
    %30 = arith.addf %27, %29 : vector<16x128xbf16>
    %31 = arith.extf %30 : vector<16x128xbf16> to vector<16x128xf32>
    %c0_23 = arith.constant 0 : index
    %c0_24 = arith.constant 0 : index
    %32 = vector.load %arg10[%c0_23, %c0_24] : memref<16x128xf32, #tpu.memory_space<vmem>>, vector<16x128xf32>
    tpu.vector_store %arg10[%c0_23, %c0_24], %31 {strides = array<i32>} : memref<16x128xf32, #tpu.memory_space<vmem>>, vector<16x128xf32>,
    return
  }
  func.func @transform_0(%arg0: i32) -> (i32, i32) {
    %c0_i32 = arith.constant 0 : i32
    %c0_i32_0 = arith.constant 0 : i32
    return %arg0, %c0_i32 : i32, i32
  }
  func.func @transform_1(%arg0: i32) -> (i32, i32) {
    %c0_i32 = arith.constant 0 : i32
    %c0_i32_0 = arith.constant 0 : i32
    %c0_i32_1 = arith.constant 0 : i32
    return %c0_i32, %c0_i32_0 : i32, i32
  }
  func.func @transform_2(%arg0: i32) -> (i32, i32) {
    %c0_i32 = arith.constant 0 : i32
    %c0_i32_0 = arith.constant 0 : i32
    %c0_i32_1 = arith.constant 0 : i32
    return %c0_i32, %c0_i32_0 : i32, i32
  }
  func.func @transform_3(%arg0: i32) -> (i32, i32) {
    %c0_i32 = arith.constant 0 : i32
    %c0_i32_0 = arith.constant 0 : i32
    %c0_i32_1 = arith.constant 0 : i32
    return %c0_i32, %c0_i32_0 : i32, i32
  }
  func.func @transform_4(%arg0: i32) -> (i32, i32) {
    %c0_i32 = arith.constant 0 : i32
    %c0_i32_0 = arith.constant 0 : i32
    %c0_i32_1 = arith.constant 0 : i32
    return %c0_i32, %c0_i32_0 : i32, i32
  }
  func.func @transform_5(%arg0: i32) -> (i32, i32) {
    %c0_i32 = arith.constant 0 : i32
    %c0_i32_0 = arith.constant 0 : i32
    %c0_i32_1 = arith.constant 0 : i32
    return %c0_i32, %c0_i32_0 : i32, i32
  }
  func.func @transform_6(%arg0: i32) -> (i32, i32) {
    %c0_i32 = arith.constant 0 : i32
    %c0_i32_0 = arith.constant 0 : i32
    %c0_i32_1 = arith.constant 0 : i32
    return %c0_i32, %c0_i32_0 : i32, i32
  }
  func.func @transform_7(%arg0: i32) -> (i32, i32) {
    %c0_i32 = arith.constant 0 : i32
    %c0_i32_0 = arith.constant 0 : i32
    %c0_i32_1 = arith.constant 0 : i32
    return %c0_i32, %c0_i32_0 : i32, i32
  }
  func.func @transform_8(%arg0: i32) -> (i32, i32) {
    %c0_i32 = arith.constant 0 : i32
    %c0_i32_0 = arith.constant 0 : i32
    %c0_i32_1 = arith.constant 0 : i32
    return %c0_i32, %c0_i32_0 : i32, i32
  }
  func.func @transform_9(%arg0: i32) -> (i32, i32) {
    %c0_i32 = arith.constant 0 : i32
    %c0_i32_0 = arith.constant 0 : i32
    return %arg0, %c0_i32 : i32, i32
  }
}

</mosaic_0001>

<llo_original>
// kernel: tpu_custom_call.1
$region0: #{tpu_custom_call.1}
  #allocation0 [shape = 'u32[]', space=smem, size = 0x4, offset = 0x4, fixed_abs, tag = 'smem constant byte address 0x4 - core index']
  #allocation1 [shape = 'u32[144,128]{1,0:T(1,128)}', space=vmem, size = 0x12000, scoped, tag = 'internal scratch']
  %s0 = inlined_call_operand.hbm [shape: bf16[16,128], index: 0, kind: input, shape index: {}]
  %s1 = inlined_call_operand.hbm [shape: bf16[128,128], index: 1, kind: input, shape index: {}]
  %s2 = inlined_call_operand.vmem [shape: bf16[1,128], index: 2, kind: input, shape index: {}]
  %s3 = inlined_call_operand.hbm [shape: bf16[128,128], index: 3, kind: input, shape index: {}]
  %s4 = inlined_call_operand.vmem [shape: bf16[1,128], index: 4, kind: input, shape index: {}]
  %s5 = inlined_call_operand.hbm [shape: bf16[128,128], index: 5, kind: input, shape index: {}]
  %s6 = inlined_call_operand.vmem [shape: bf16[1,128], index: 6, kind: input, shape index: {}]
  %s7 = inlined_call_operand.hbm [shape: bf16[128,128], index: 7, kind: input, shape index: {}]
  %s8 = inlined_call_operand.vmem [shape: bf16[1,128], index: 8, kind: input, shape index: {}]
  %s9 = inlined_call_operand.hbm [shape: f32[16,128], index: 9, kind: output, shape index: {}]
  %s10 = sld [smem:[#allocation0]]
  $region66: #{tpu_custom_call.1} parent=0
    _
  %s12 = ssub.s32 1, %s10
  %s13 = scalar_select 0, %s12, %s10
  $region1: #{tpu_custom_call.1} parent=0
    #allocation2 [shape = 'u8[4096]{0}', space=vmem, size = 0x1000, scoped, tag = 'input window, operand 0, single buffered']
    #allocation3 [shape = 's32[1]{0}', space=sflag, size = 0x4, scoped, tag = 'scoped memory for tpu_custom_call.1']
    #allocation4 [shape = 's32[1]{0}', space=sflag, size = 0x4, scoped, tag = 'scoped memory for tpu_custom_call.1']
    #allocation5 [shape = 'u8[32768]{0}', space=vmem, size = 0x8000, scoped, tag = 'input window, operand 1, single buffered']
    #allocation6 [shape = 's32[1]{0}', space=sflag, size = 0x4, scoped, tag = 'scoped memory for tpu_custom_call.1']
    #allocation7 [shape = 'u8[32768]{0}', space=vmem, size = 0x8000, scoped, tag = 'input window, operand 3, single buffered']
    #allocation8 [shape = 'u8[32768]{0}', space=vmem, size = 0x8000, scoped, tag = 'input window, operand 5, single buffered']
    #allocation9 [shape = 's32[1]{0}', space=sflag, size = 0x4, scoped, tag = 'scoped memory for tpu_custom_call.1']
    #allocation10 [shape = 'u8[32768]{0}', space=vmem, size = 0x8000, scoped, tag = 'input window, operand 7, single buffered']
    #allocation11 [shape = 'u8[8192]{0}', space=vmem, size = 0x2000, scoped, tag = 'output window, operand 0, single buffered']
    %14 = vsyncpa [#allocation3], 0
    %15 = vsyncpa [#allocation6], 0
    %16 = vsyncpa [#allocation9], 0
    %17 = vsyncpa [#allocation4], 0
    // Predicated region
    $region2: #{tpu_custom_call.1} parent=1 // pred_check
      _
    $region3: #{tpu_custom_call.1} parent=1 // pred_check_branch
      %19 = sbr.rel (0) target = $region5
    $region4: #{tpu_custom_call.1} parent=1 // pred_region
      %s21 = ssub.s32 128, 128
      %22 = vsyncadd [#allocation3], %s21
      %s23 = sshll.u32 [#allocation2], 4
      %s24 = int_to_ptr.vmem [resolvable:$true] %s23
      %29 = dma.hbm_to_vmem [thread:$0]  %s0, 128, %s24, [#allocation3], 64, 64, 4
    $region5: #{tpu_custom_call.1} parent=1 // pred_fallthru
      _
    // Predicated region
    $region6: #{tpu_custom_call.1} parent=1 // pred_check
      _
    $region7: #{tpu_custom_call.1} parent=1 // pred_check_branch
      %31 = sbr.rel (0) target = $region9
    $region8: #{tpu_custom_call.1} parent=1 // pred_region
      %s33 = ssub.s32 1024, 1024
      %34 = vsyncadd [#allocation6], %s33
      %s35 = sshll.u32 [#allocation5], 4
      %s36 = int_to_ptr.vmem [resolvable:$true] %s35
      %41 = dma.hbm_to_vmem [thread:$0]  %s1, 1024, %s36, [#allocation6], 64, 64, 4
    $region9: #{tpu_custom_call.1} parent=1 // pred_fallthru
      _
    // Predicated region
    $region10: #{tpu_custom_call.1} parent=1 // pred_check
      _
    $region11: #{tpu_custom_call.1} parent=1 // pred_check_branch
      %43 = sbr.rel (0) target = $region13
    $region12: #{tpu_custom_call.1} parent=1 // pred_region
      _
    $region13: #{tpu_custom_call.1} parent=1 // pred_fallthru
      _
    // Predicated region
    $region14: #{tpu_custom_call.1} parent=1 // pred_check
      _
    $region15: #{tpu_custom_call.1} parent=1 // pred_check_branch
      %45 = sbr.rel (0) target = $region17
    $region16: #{tpu_custom_call.1} parent=1 // pred_region
      %s47 = ssub.s32 1024, 1024
      %48 = vsyncadd [#allocation6], %s47
      %s49 = sshll.u32 [#allocation7], 4
      %s50 = int_to_ptr.vmem [resolvable:$true] %s49
      %55 = dma.hbm_to_vmem [thread:$0]  %s3, 1024, %s50, [#allocation6], 64, 64, 4
    $region17: #{tpu_custom_call.1} parent=1 // pred_fallthru
      _
    // Predicated region
    $region18: #{tpu_custom_call.1} parent=1 // pred_check
      _
    $region19: #{tpu_custom_call.1} parent=1 // pred_check_branch
      %57 = sbr.rel (0) target = $region21
    $region20: #{tpu_custom_call.1} parent=1 // pred_region
      _
    $region21: #{tpu_custom_call.1} parent=1 // pred_fallthru
      _
    // Predicated region
    $region22: #{tpu_custom_call.1} parent=1 // pred_check
      _
    $region23: #{tpu_custom_call.1} parent=1 // pred_check_branch
      %59 = sbr.rel (0) target = $region25
    $region24: #{tpu_custom_call.1} parent=1 // pred_region
      %s61 = ssub.s32 1024, 1024
      %62 = vsyncadd [#allocation9], %s61
      %s63 = sshll.u32 [#allocation8], 4
      %s64 = int_to_ptr.vmem [resolvable:$true] %s63
      %69 = dma.hbm_to_vmem [thread:$0]  %s5, 1024, %s64, [#allocation9], 64, 64, 4
    $region25: #{tpu_custom_call.1} parent=1 // pred_fallthru
      _
    // Predicated region
    $region26: #{tpu_custom_call.1} parent=1 // pred_check
      _
    $region27: #{tpu_custom_call.1} parent=1 // pred_check_branch
      %71 = sbr.rel (0) target = $region29
    $region28: #{tpu_custom_call.1} parent=1 // pred_region
      _
    $region29: #{tpu_custom_call.1} parent=1 // pred_fallthru
      _
    // Predicated region
    $region30: #{tpu_custom_call.1} parent=1 // pred_check
      _
    $region31: #{tpu_custom_call.1} parent=1 // pred_check_branch
      %73 = sbr.rel (0) target = $region33
    $region32: #{tpu_custom_call.1} parent=1 // pred_region
      %s75 = ssub.s32 1024, 1024
      %76 = vsyncadd [#allocation9], %s75
      %s77 = sshll.u32 [#allocation10], 4
      %s78 = int_to_ptr.vmem [resolvable:$true] %s77
      %83 = dma.hbm_to_vmem [thread:$0]  %s7, 1024, %s78, [#allocation9], 64, 64, 4
    $region33: #{tpu_custom_call.1} parent=1 // pred_fallthru
      _
    // Predicated region
    $region34: #{tpu_custom_call.1} parent=1 // pred_check
      _
    $region35: #{tpu_custom_call.1} parent=1 // pred_check_branch
      %85 = sbr.rel (0) target = $region37
    $region36: #{tpu_custom_call.1} parent=1 // pred_region
      _
    $region37: #{tpu_custom_call.1} parent=1 // pred_fallthru
      _
    // Predicated region
    $region38: #{tpu_custom_call.1} parent=1 // pred_check
      _
    $region39: #{tpu_custom_call.1} parent=1 // pred_check_branch
      %87 = sbr.rel (0) target = $region41
    $region40: #{tpu_custom_call.1} parent=1 // pred_region
      %88 = dma.done [#allocation3], 128
    $region41: #{tpu_custom_call.1} parent=1 // pred_fallthru
      _
    // Predicated region
    $region42: #{tpu_custom_call.1} parent=1 // pred_check
      _
    $region43: #{tpu_custom_call.1} parent=1 // pred_check_branch
      %90 = sbr.rel (0) target = $region45
    $region44: #{tpu_custom_call.1} parent=1 // pred_region
      %91 = dma.done [#allocation6], 1024
    $region45: #{tpu_custom_call.1} parent=1 // pred_fallthru
      _
    // Predicated region
    $region46: #{tpu_custom_call.1} parent=1 // pred_check
      _
    $region47: #{tpu_custom_call.1} parent=1 // pred_check_branch
      %93 = sbr.rel (0) target = $region49
    $region48: #{tpu_custom_call.1} parent=1 // pred_region
      %94 = dma.done [#allocation6], 1024
    $region49: #{tpu_custom_call.1} parent=1 // pred_fallthru
      _
    // Predicated region
    $region50: #{tpu_custom_call.1} parent=1 // pred_check
      _
    $region51: #{tpu_custom_call.1} parent=1 // pred_check_branch
      %96 = sbr.rel (0) target = $region53
    $region52: #{tpu_custom_call.1} parent=1 // pred_region
      %97 = dma.done [#allocation9], 1024
    $region53: #{tpu_custom_call.1} parent=1 // pred_fallthru
      _
    // Predicated region
    $region54: #{tpu_custom_call.1} parent=1 // pred_check
      _
    $region55: #{tpu_custom_call.1} parent=1 // pred_check_branch
      %99 = sbr.rel (0) target = $region57
    $region56: #{tpu_custom_call.1} parent=1 // pred_region
      %100 = dma.done [#allocation9], 1024
    $region57: #{tpu_custom_call.1} parent=1 // pred_fallthru
      _
    %v102 = vld [vmem:[#allocation2] sm:$0xf]
    %v103 = vld [vmem:[#allocation2 + $0x4] sm:$0xf]
    %v104 = vld [vmem:[#allocation5] sm:$0xf]
    %v105 = vld [vmem:[#allocation5 + $0x4] sm:$0xf]
    %v106 = vld [vmem:[#allocation5 + $0x8] sm:$0xf]
    %v107 = vld [vmem:[#allocation5 + $0xc] sm:$0xf]
    %v108 = vld [vmem:[#allocation5 + $0x10] sm:$0xf]
    %v109 = vld [vmem:[#allocation5 + $0x14] sm:$0xf]
    %v110 = vld [vmem:[#allocation5 + $0x18] sm:$0xf]
    %v111 = vld [vmem:[#allocation5 + $0x1c] sm:$0xf]
    %v112 = vld [vmem:[#allocation5 + $0x20] sm:$0xf]
    %v113 = vld [vmem:[#allocation5 + $0x24] sm:$0xf]
    %v114 = vld [vmem:[#allocation5 + $0x28] sm:$0xf]
    %v115 = vld [vmem:[#allocation5 + $0x2c] sm:$0xf]
    %v116 = vld [vmem:[#allocation5 + $0x30] sm:$0xf]
    %v117 = vld [vmem:[#allocation5 + $0x34] sm:$0xf]
    %v118 = vld [vmem:[#allocation5 + $0x38] sm:$0xf]
    %v119 = vld [vmem:[#allocation5 + $0x3c] sm:$0xf]
    %v122 = vunpack.c.l.b16 %v102
    %v123 = vunpack.c.l.b16 %v103
    %v124 = vpack.c.b16 %v123, %v122
    %v142 = vunpack.c.l.b16 %v104
    %v143 = vunpack.c.l.b16 %v105
    %v144 = vunpack.c.l.b16 %v106
    %v145 = vunpack.c.l.b16 %v107
    %v146 = vunpack.c.l.b16 %v108
    %v147 = vunpack.c.l.b16 %v109
    %v148 = vunpack.c.l.b16 %v110
    %v149 = vunpack.c.l.b16 %v111
    %v150 = vunpack.c.l.b16 %v112
    %v151 = vunpack.c.l.b16 %v113
    %v152 = vunpack.c.l.b16 %v114
    %v153 = vunpack.c.l.b16 %v115
    %v154 = vunpack.c.l.b16 %v116
    %v155 = vunpack.c.l.b16 %v117
    %v156 = vunpack.c.l.b16 %v118
    %v157 = vunpack.c.l.b16 %v119
    %v158 = vpack.c.b16 %v143, %v142
    %v159 = vpack.c.b16 %v145, %v144
    %v160 = vpack.c.b16 %v147, %v146
    %v161 = vpack.c.b16 %v149, %v148
    %v162 = vpack.c.b16 %v151, %v150
    %v163 = vpack.c.b16 %v153, %v152
    %v164 = vpack.c.b16 %v155, %v154
    %v165 = vpack.c.b16 %v157, %v156
    %174 = vmatprep.subr.bf16.mxu0 0
    %175 = vmatpush1.bf16.msra.mxu0 %v158
    %176 = vmatprep.subr.bf16.mxu0 0
    %177 = vmatpush1.bf16.msra.mxu0 %v159
    %178 = vmatprep.subr.bf16.mxu0 0
    %179 = vmatpush1.bf16.msra.mxu0 %v160
    %180 = vmatprep.subr.bf16.mxu0 0
    %181 = vmatpush1.bf16.msra.mxu0 %v161
    %182 = vmatprep.subr.bf16.mxu0 0
    %183 = vmatpush1.bf16.msra.mxu0 %v162
    %184 = vmatprep.subr.bf16.mxu0 0
    %185 = vmatpush1.bf16.msra.mxu0 %v163
    %186 = vmatprep.subr.bf16.mxu0 0
    %187 = vmatpush1.bf16.msra.mxu0 %v164
    %188 = vmatprep.subr.bf16.mxu0 0
    %189 = vmatpush1.bf16.msra.mxu0 %v165
    %190 = vmatprep.subr.bf16.mxu0 0
    %191 = vmatpush1.bf16.msra.mxu0 0
    %192 = vmatprep.subr.bf16.mxu0 0
    %193 = vmatpush1.bf16.msra.mxu0 0
    %194 = vmatprep.subr.bf16.mxu0 0
    %195 = vmatpush1.bf16.msra.mxu0 0
    %196 = vmatprep.subr.bf16.mxu0 0
    %197 = vmatpush1.bf16.msra.mxu0 0
    %198 = vmatprep.subr.bf16.mxu0 0
    %199 = vmatpush1.bf16.msra.mxu0 0
    %200 = vmatprep.subr.bf16.mxu0 0
    %201 = vmatpush1.bf16.msra.mxu0 0
    %202 = vmatprep.subr.bf16.mxu0 0
    %203 = vmatpush1.bf16.msra.mxu0 0
    %204 = vmatprep.subr.bf16.mxu0 0
    %205 = vmatpush1.bf16.msra.mxu0 0
    %206 = vmatprep.mubr.bf16.mxu0 0
    %207 = vmatmul.mubr.bf16.gmra.mrb[0].mxu0 %v124
    %v208 = vpop.f32.mrb[0].mxu0
    %v209 = vadd.f32 0.0, %v208
    %v210 = vpop.f32.mrb[0].mxu0
    %v211 = vpop.f32.mrb[0].mxu0
    %v212 = vadd.f32 0.0, %v211
    %v213 = vpop.f32.mrb[0].mxu0
    %214 = vdwg.mxu0
    %v215 = vpack.c.bf16 %v212, %v209
    %v216 = vld [vmem:[%s2] sm:$0x1]
    %v218 = vpack.i.b16 %v216, %v216
    %v220 = vlaneseq
    %v221 = vshrl.u32 %v220, 7
    %v222 = vsub.s32 0, %v221
    %v223 = vrot.slane %v218, %v222
    %v224 = vadd.bf16 %v215, %v223
    %v225 = vmax.bf16 %v224, 0
    %v226 = vld [vmem:[#allocation7] sm:$0xf]
    %v227 = vld [vmem:[#allocation7 + $0x4] sm:$0xf]
    %v228 = vld [vmem:[#allocation7 + $0x8] sm:$0xf]
    %v229 = vld [vmem:[#allocation7 + $0xc] sm:$0xf]
    %v230 = vld [vmem:[#allocation7 + $0x10] sm:$0xf]
    %v231 = vld [vmem:[#allocation7 + $0x14] sm:$0xf]
    %v232 = vld [vmem:[#allocation7 + $0x18] sm:$0xf]
    %v233 = vld [vmem:[#allocation7 + $0x1c] sm:$0xf]
    %v234 = vld [vmem:[#allocation7 + $0x20] sm:$0xf]
    %v235 = vld [vmem:[#allocation7 + $0x24] sm:$0xf]
    %v236 = vld [vmem:[#allocation7 + $0x28] sm:$0xf]
    %v237 = vld [vmem:[#allocation7 + $0x2c] sm:$0xf]
    %v238 = vld [vmem:[#allocation7 + $0x30] sm:$0xf]
    %v239 = vld [vmem:[#allocation7 + $0x34] sm:$0xf]
    %v240 = vld [vmem:[#allocation7 + $0x38] sm:$0xf]
    %v241 = vld [vmem:[#allocation7 + $0x3c] sm:$0xf]
    %v258 = vunpack.c.l.b16 %v226
    %v259 = vunpack.c.l.b16 %v227
    %v260 = vunpack.c.l.b16 %v228
    %v261 = vunpack.c.l.b16 %v229
    %v262 = vunpack.c.l.b16 %v230
    %v263 = vunpack.c.l.b16 %v231
    %v264 = vunpack.c.l.b16 %v232
    %v265 = vunpack.c.l.b16 %v233
    %v266 = vunpack.c.l.b16 %v234
    %v267 = vunpack.c.l.b16 %v235
    %v268 = vunpack.c.l.b16 %v236
    %v269 = vunpack.c.l.b16 %v237
    %v270 = vunpack.c.l.b16 %v238
    %v271 = vunpack.c.l.b16 %v239
    %v272 = vunpack.c.l.b16 %v240
    %v273 = vunpack.c.l.b16 %v241
    %v274 = vpack.c.b16 %v259, %v258
    %v275 = vpack.c.b16 %v261, %v260
    %v276 = vpack.c.b16 %v263, %v262
    %v277 = vpack.c.b16 %v265, %v264
    %v278 = vpack.c.b16 %v267, %v266
    %v279 = vpack.c.b16 %v269, %v268
    %v280 = vpack.c.b16 %v271, %v270
    %v281 = vpack.c.b16 %v273, %v272
    %290 = vmatprep.subr.bf16.mxu0 0
    %291 = vmatpush1.bf16.msra.mxu0 %v274
    %292 = vmatprep.subr.bf16.mxu0 0
    %293 = vmatpush1.bf16.msra.mxu0 %v275
    %294 = vmatprep.subr.bf16.mxu0 0
    %295 = vmatpush1.bf16.msra.mxu0 %v276
    %296 = vmatprep.subr.bf16.mxu0 0
    %297 = vmatpush1.bf16.msra.mxu0 %v277
    %298 = vmatprep.subr.bf16.mxu0 0
    %299 = vmatpush1.bf16.msra.mxu0 %v278
    %300 = vmatprep.subr.bf16.mxu0 0
    %301 = vmatpush1.bf16.msra.mxu0 %v279
    %302 = vmatprep.subr.bf16.mxu0 0
    %303 = vmatpush1.bf16.msra.mxu0 %v280
    %304 = vmatprep.subr.bf16.mxu0 0
    %305 = vmatpush1.bf16.msra.mxu0 %v281
    %306 = vmatprep.subr.bf16.mxu0 0
    %307 = vmatpush1.bf16.msra.mxu0 0
    %308 = vmatprep.subr.bf16.mxu0 0
    %309 = vmatpush1.bf16.msra.mxu0 0
    %310 = vmatprep.subr.bf16.mxu0 0
    %311 = vmatpush1.bf16.msra.mxu0 0
    %312 = vmatprep.subr.bf16.mxu0 0
    %313 = vmatpush1.bf16.msra.mxu0 0
    %314 = vmatprep.subr.bf16.mxu0 0
    %315 = vmatpush1.bf16.msra.mxu0 0
    %316 = vmatprep.subr.bf16.mxu0 0
    %317 = vmatpush1.bf16.msra.mxu0 0
    %318 = vmatprep.subr.bf16.mxu0 0
    %319 = vmatpush1.bf16.msra.mxu0 0
    %320 = vmatprep.subr.bf16.mxu0 0
    %321 = vmatpush1.bf16.msra.mxu0 0
    %322 = vmatprep.mubr.bf16.mxu0 0
    %323 = vmatmul.mubr.bf16.gmra.mrb[0].mxu0 %v225
    %v324 = vpop.f32.mrb[0].mxu0
    %v325 = vadd.f32 0.0, %v324
    %v326 = vpop.f32.mrb[0].mxu0
    %v327 = vpop.f32.mrb[0].mxu0
    %v328 = vadd.f32 0.0, %v327
    %v329 = vpop.f32.mrb[0].mxu0
    %330 = vdwg.mxu0
    %v331 = vpack.c.bf16 %v328, %v325
    %v332 = vld [vmem:[%s4] sm:$0x1]
    %v334 = vpack.i.b16 %v332, %v332
    %v336 = vlaneseq
    %v337 = vshrl.u32 %v336, 7
    %v338 = vsub.s32 0, %v337
    %v339 = vrot.slane %v334, %v338
    %v340 = vadd.bf16 %v331, %v339
    %v341 = vmax.bf16 %v340, 0
    %v342 = vld [vmem:[#allocation8] sm:$0xf]
    %v343 = vld [vmem:[#allocation8 + $0x4] sm:$0xf]
    %v344 = vld [vmem:[#allocation8 + $0x8] sm:$0xf]
    %v345 = vld [vmem:[#allocation8 + $0xc] sm:$0xf]
    %v346 = vld [vmem:[#allocation8 + $0x10] sm:$0xf]
    %v347 = vld [vmem:[#allocation8 + $0x14] sm:$0xf]
    %v348 = vld [vmem:[#allocation8 + $0x18] sm:$0xf]
    %v349 = vld [vmem:[#allocation8 + $0x1c] sm:$0xf]
    %v350 = vld [vmem:[#allocation8 + $0x20] sm:$0xf]
    %v351 = vld [vmem:[#allocation8 + $0x24] sm:$0xf]
    %v352 = vld [vmem:[#allocation8 + $0x28] sm:$0xf]
    %v353 = vld [vmem:[#allocation8 + $0x2c] sm:$0xf]
    %v354 = vld [vmem:[#allocation8 + $0x30] sm:$0xf]
    %v355 = vld [vmem:[#allocation8 + $0x34] sm:$0xf]
    %v356 = vld [vmem:[#allocation8 + $0x38] sm:$0xf]
    %v357 = vld [vmem:[#allocation8 + $0x3c] sm:$0xf]
    %v374 = vunpack.c.l.b16 %v342
    %v375 = vunpack.c.l.b16 %v343
    %v376 = vunpack.c.l.b16 %v344
    %v377 = vunpack.c.l.b16 %v345
    %v378 = vunpack.c.l.b16 %v346
    %v379 = vunpack.c.l.b16 %v347
    %v380 = vunpack.c.l.b16 %v348
    %v381 = vunpack.c.l.b16 %v349
    %v382 = vunpack.c.l.b16 %v350
    %v383 = vunpack.c.l.b16 %v351
    %v384 = vunpack.c.l.b16 %v352
    %v385 = vunpack.c.l.b16 %v353
    %v386 = vunpack.c.l.b16 %v354
    %v387 = vunpack.c.l.b16 %v355
    %v388 = vunpack.c.l.b16 %v356
    %v389 = vunpack.c.l.b16 %v357
    %v390 = vpack.c.b16 %v375, %v374
    %v391 = vpack.c.b16 %v377, %v376
    %v392 = vpack.c.b16 %v379, %v378
    %v393 = vpack.c.b16 %v381, %v380
    %v394 = vpack.c.b16 %v383, %v382
    %v395 = vpack.c.b16 %v385, %v384
    %v396 = vpack.c.b16 %v387, %v386
    %v397 = vpack.c.b16 %v389, %v388
    %406 = vmatprep.subr.bf16.mxu0 0
    %407 = vmatpush1.bf16.msra.mxu0 %v390
    %408 = vmatprep.subr.bf16.mxu0 0
    %409 = vmatpush1.bf16.msra.mxu0 %v391
    %410 = vmatprep.subr.bf16.mxu0 0
    %411 = vmatpush1.bf16.msra.mxu0 %v392
    %412 = vmatprep.subr.bf16.mxu0 0
    %413 = vmatpush1.bf16.msra.mxu0 %v393
    %414 = vmatprep.subr.bf16.mxu0 0
    %415 = vmatpush1.bf16.msra.mxu0 %v394
    %416 = vmatprep.subr.bf16.mxu0 0
    %417 = vmatpush1.bf16.msra.mxu0 %v395
    %418 = vmatprep.subr.bf16.mxu0 0
    %419 = vmatpush1.bf16.msra.mxu0 %v396
    %420 = vmatprep.subr.bf16.mxu0 0
    %421 = vmatpush1.bf16.msra.mxu0 %v397
    %422 = vmatprep.subr.bf16.mxu0 0
    %423 = vmatpush1.bf16.msra.mxu0 0
    %424 = vmatprep.subr.bf16.mxu0 0
    %425 = vmatpush1.bf16.msra.mxu0 0
    %426 = vmatprep.subr.bf16.mxu0 0
    %427 = vmatpush1.bf16.msra.mxu0 0
    %428 = vmatprep.subr.bf16.mxu0 0
    %429 = vmatpush1.bf16.msra.mxu0 0
    %430 = vmatprep.subr.bf16.mxu0 0
    %431 = vmatpush1.bf16.msra.mxu0 0
    %432 = vmatprep.subr.bf16.mxu0 0
    %433 = vmatpush1.bf16.msra.mxu0 0
    %434 = vmatprep.subr.bf16.mxu0 0
    %435 = vmatpush1.bf16.msra.mxu0 0
    %436 = vmatprep.subr.bf16.mxu0 0
    %437 = vmatpush1.bf16.msra.mxu0 0
    %438 = vmatprep.mubr.bf16.mxu0 0
    %439 = vmatmul.mubr.bf16.gmra.mrb[0].mxu0 %v341
    %v440 = vpop.f32.mrb[0].mxu0
    %v441 = vadd.f32 0.0, %v440
    %v442 = vpop.f32.mrb[0].mxu0
    %v443 = vpop.f32.mrb[0].mxu0
    %v444 = vadd.f32 0.0, %v443
    %v445 = vpop.f32.mrb[0].mxu0
    %446 = vdwg.mxu0
    %v447 = vpack.c.bf16 %v444, %v441
    %v448 = vld [vmem:[%s6] sm:$0x1]
    %v450 = vpack.i.b16 %v448, %v448
    %v452 = vlaneseq
    %v453 = vshrl.u32 %v452, 7
    %v454 = vsub.s32 0, %v453
    %v455 = vrot.slane %v450, %v454
    %v456 = vadd.bf16 %v447, %v455
    %v457 = vmax.bf16 %v456, 0
    %v458 = vld [vmem:[#allocation10] sm:$0xf]
    %v459 = vld [vmem:[#allocation10 + $0x4] sm:$0xf]
    %v460 = vld [vmem:[#allocation10 + $0x8] sm:$0xf]
    %v461 = vld [vmem:[#allocation10 + $0xc] sm:$0xf]
    %v462 = vld [vmem:[#allocation10 + $0x10] sm:$0xf]
    %v463 = vld [vmem:[#allocation10 + $0x14] sm:$0xf]
    %v464 = vld [vmem:[#allocation10 + $0x18] sm:$0xf]
    %v465 = vld [vmem:[#allocation10 + $0x1c] sm:$0xf]
    %v466 = vld [vmem:[#allocation10 + $0x20] sm:$0xf]
    %v467 = vld [vmem:[#allocation10 + $0x24] sm:$0xf]
    %v468 = vld [vmem:[#allocation10 + $0x28] sm:$0xf]
    %v469 = vld [vmem:[#allocation10 + $0x2c] sm:$0xf]
    %v470 = vld [vmem:[#allocation10 + $0x30] sm:$0xf]
    %v471 = vld [vmem:[#allocation10 + $0x34] sm:$0xf]
    %v472 = vld [vmem:[#allocation10 + $0x38] sm:$0xf]
    %v473 = vld [vmem:[#allocation10 + $0x3c] sm:$0xf]
    %v490 = vunpack.c.l.b16 %v458
    %v491 = vunpack.c.l.b16 %v459
    %v492 = vunpack.c.l.b16 %v460
    %v493 = vunpack.c.l.b16 %v461
    %v494 = vunpack.c.l.b16 %v462
    %v495 = vunpack.c.l.b16 %v463
    %v496 = vunpack.c.l.b16 %v464
    %v497 = vunpack.c.l.b16 %v465
    %v498 = vunpack.c.l.b16 %v466
    %v499 = vunpack.c.l.b16 %v467
    %v500 = vunpack.c.l.b16 %v468
    %v501 = vunpack.c.l.b16 %v469
    %v502 = vunpack.c.l.b16 %v470
    %v503 = vunpack.c.l.b16 %v471
    %v504 = vunpack.c.l.b16 %v472
    %v505 = vunpack.c.l.b16 %v473
    %v506 = vpack.c.b16 %v491, %v490
    %v507 = vpack.c.b16 %v493, %v492
    %v508 = vpack.c.b16 %v495, %v494
    %v509 = vpack.c.b16 %v497, %v496
    %v510 = vpack.c.b16 %v499, %v498
    %v511 = vpack.c.b16 %v501, %v500
    %v512 = vpack.c.b16 %v503, %v502
    %v513 = vpack.c.b16 %v505, %v504
    %522 = vmatprep.subr.bf16.mxu0 0
    %523 = vmatpush1.bf16.msra.mxu0 %v506
    %524 = vmatprep.subr.bf16.mxu0 0
    %525 = vmatpush1.bf16.msra.mxu0 %v507
    %526 = vmatprep.subr.bf16.mxu0 0
    %527 = vmatpush1.bf16.msra.mxu0 %v508
    %528 = vmatprep.subr.bf16.mxu0 0
    %529 = vmatpush1.bf16.msra.mxu0 %v509
    %530 = vmatprep.subr.bf16.mxu0 0
    %531 = vmatpush1.bf16.msra.mxu0 %v510
    %532 = vmatprep.subr.bf16.mxu0 0
    %533 = vmatpush1.bf16.msra.mxu0 %v511
    %534 = vmatprep.subr.bf16.mxu0 0
    %535 = vmatpush1.bf16.msra.mxu0 %v512
    %536 = vmatprep.subr.bf16.mxu0 0
    %537 = vmatpush1.bf16.msra.mxu0 %v513
    %538 = vmatprep.subr.bf16.mxu0 0
    %539 = vmatpush1.bf16.msra.mxu0 0
    %540 = vmatprep.subr.bf16.mxu0 0
    %541 = vmatpush1.bf16.msra.mxu0 0
    %542 = vmatprep.subr.bf16.mxu0 0
    %543 = vmatpush1.bf16.msra.mxu0 0
    %544 = vmatprep.subr.bf16.mxu0 0
    %545 = vmatpush1.bf16.msra.mxu0 0
    %546 = vmatprep.subr.bf16.mxu0 0
    %547 = vmatpush1.bf16.msra.mxu0 0
    %548 = vmatprep.subr.bf16.mxu0 0
    %549 = vmatpush1.bf16.msra.mxu0 0
    %550 = vmatprep.subr.bf16.mxu0 0
    %551 = vmatpush1.bf16.msra.mxu0 0
    %552 = vmatprep.subr.bf16.mxu0 0
    %553 = vmatpush1.bf16.msra.mxu0 0
    %554 = vmatprep.mubr.bf16.mxu0 0
    %555 = vmatmul.mubr.bf16.gmra.mrb[0].mxu0 %v457
    %v556 = vpop.f32.mrb[0].mxu0
    %v557 = vadd.f32 0.0, %v556
    %v558 = vpop.f32.mrb[0].mxu0
    %v559 = vpop.f32.mrb[0].mxu0
    %v560 = vadd.f32 0.0, %v559
    %v561 = vpop.f32.mrb[0].mxu0
    %562 = vdwg.mxu0
    %v563 = vpack.c.bf16 %v560, %v557
    %v564 = vld [vmem:[%s8] sm:$0x1]
    %v566 = vpack.i.b16 %v564, %v564
    %v568 = vlaneseq
    %v569 = vshrl.u32 %v568, 7
    %v570 = vsub.s32 0, %v569
    %v571 = vrot.slane %v566, %v570
    %v572 = vadd.bf16 %v563, %v571
    %v573 = vunpack.c.l.bf16 %v572
    %v574 = vunpack.c.h.bf16 %v572
    %575 = vst [vmem:[#allocation11] sm:$0xff] %v573
    %576 = vst [vmem:[#allocation11 + $0x8] sm:$0xff] %v574
    // Predicated region
    $region58: #{tpu_custom_call.1} parent=1 // pred_check
      _
    $region59: #{tpu_custom_call.1} parent=1 // pred_check_branch
      %578 = sbr.rel (0) target = $region61
    $region60: #{tpu_custom_call.1} parent=1 // pred_region
      %s580 = ssub.s32 256, 256
      %581 = vsyncadd [#allocation4], %s580
      %s582 = sshll.u32 [#allocation11], 4
      %s583 = int_to_ptr.vmem [resolvable:$true] %s582
      %588 = dma.vmem_to_hbm [thread:$0]  %s583, 256, %s9, [#allocation4], 128, 128, 8
    $region61: #{tpu_custom_call.1} parent=1 // pred_fallthru
      _
    // Predicated region
    $region62: #{tpu_custom_call.1} parent=1 // pred_check
      _
    $region63: #{tpu_custom_call.1} parent=1 // pred_check_branch
      %590 = sbr.rel (0) target = $region65
    $region64: #{tpu_custom_call.1} parent=1 // pred_region
      %591 = dma.done [#allocation4], 256
    $region65: #{tpu_custom_call.1} parent=1 // pred_fallthru
      _
    %592 = vsyncpa [#allocation3], 1
    %593 = vsyncpa [#allocation6], 1
    %594 = vsyncpa [#allocation9], 1
    %595 = vsyncpa [#allocation4], 1

</llo_original>
